<compile_context>
chip_gen: v7x
topology: tpu7x:2x2x1
jax: 0.10.0
libtpu: 0.0.40
codegen_flags: <defaults>
</compile_context>

<pallas_src>
import functools
import math

import jax
import jax.numpy as jnp
from jax.experimental import pallas as pl
from jax.experimental.pallas import tpu as pltpu


def _round_up(x, m):
    return ((x + m - 1) // m) * m


def _vmem_capacity_bytes():
    """Per-generation VMEM capacity; conservative 64 MiB fallback (safe on v7x)."""
    try:
        info = pltpu.get_tpu_info()
        cap = getattr(info, "vmem_capacity_bytes", None)
        if cap:
            return int(cap)
    except Exception:
        pass
    return 64 * 1024 * 1024


def _tile_bytes(bm, in_dim, out_dim, r_pad, itemsize):
    """VMEM footprint for one grid step, including intermediates & double buffers."""
    x_tiles = 2 * bm * in_dim * itemsize                       # double-buffered x tile
    o_tiles = 2 * bm * out_dim * itemsize                      # double-buffered y tile
    w_tiles = 2 * (in_dim * r_pad + r_pad * out_dim) * itemsize  # weights (2 bufs each)
    inter = bm * out_dim * 4                                   # f32 2nd-matmul result
    inter += bm * r_pad * (4 + itemsize)                       # xa in f32 + cast dtype
    return x_tiles + o_tiles + w_tiles + inter


def _lora_kernel(x_ref, wa_ref, wb_ref, o_ref, *, scaling):
    # Both matmuls run on the MXU with f32 accumulation. The scale is applied
    # on the narrow (bm, r_pad) intermediate (out_dim/r_pad fewer VPU muls than
    # scaling the epilogue), which is then cast to the weight dtype so the
    # second matmul also gets native MXU operands.
    x = x_ref[...]
    xa = jnp.dot(x, wa_ref[...], preferred_element_type=jnp.float32)
    xa = (scaling * xa).astype(wb_ref.dtype)
    out = jnp.dot(xa, wb_ref[...], preferred_element_type=jnp.float32)
    o_ref[...] = out.astype(o_ref.dtype)


def lora_forward(x, w_a, w_b, rank, alpha, *, block_m=512, force_pallas=False):
    """LoRALayer.forward for x of shape (..., in_dim)."""
    if rank <= 0:
        # Matches the PyTorch module: returns zeros with x's shape
        # (PyTorch implicitly assumes in_dim == out_dim in this branch).
        return jnp.zeros_like(x)

    in_dim, r = w_a.shape
    r_b, out_dim = w_b.shape
    assert r_b == r, "W_a / W_b rank mismatch"
    scaling = float(alpha) / float(rank)

    dtype = x.dtype
    lead_shape = x.shape[:-1]
    m = math.prod(lead_shape) if lead_shape else 1
    x2d = x.reshape(m, in_dim)

    itemsize = jnp.dtype(dtype).itemsize
    io_bytes = (m * (in_dim + out_dim) + in_dim * r + r * out_dim) * itemsize

    # Tiny-problem gate: need enough rows for a multi-step pipelined grid and
    # enough HBM traffic to amortize custom-call + pad/cast overhead; otherwise
    # XLA fusion with the surrounding base projection wins.
    if not force_pallas and (m < 256 or io_bytes < (1 << 20)):
        y2d = (scaling * (x2d.astype(jnp.float32)
                          @ w_a.astype(jnp.float32)
                          @ w_b.astype(jnp.float32))).astype(dtype)
        return y2d.reshape(*lead_shape, out_dim)

    # Cast weights to the activation dtype (bf16 weights -> native MXU inputs).
    w_a = w_a.astype(dtype)
    w_b = w_b.astype(dtype)

    # rank padded only to the sublane multiple (zero padding; numerically free).
    sub = 16 if dtype == jnp.bfloat16 else 8
    r_pad = _round_up(r, sub)
    if r_pad != r:
        w_a = jnp.pad(w_a, ((0, 0), (0, r_pad - r)))
        w_b = jnp.pad(w_b, ((0, r_pad - r), (0, 0)))

    # --- choose bm: grid-length cap first, then the per-generation VMEM budget
    bm = min(block_m, _round_up(m, sub))
    bm = max(sub, _round_up(bm, sub))
    # Keep >= ~4 grid steps: 2 per TensorCore on v7x, and read/write-DMA overlap
    # with compute on every generation. Floor of ~64 rows (or all of m if tiny).
    grid_cap = _round_up(max(pl.cdiv(m, 4), 1), sub)
    floor_bm = min(_round_up(m, sub), 64)
    bm = max(floor_bm, min(bm, grid_cap))

    vmem_cap = _vmem_capacity_bytes()
    tile_budget = int(vmem_cap * 0.70)          # ~45 MiB on v7x, ~90 MiB on v5e/v6e
    while bm > floor_bm and _tile_bytes(bm, in_dim, out_dim, r_pad, itemsize) > tile_budget:
        bm = max(floor_bm, _round_up(bm // 2, sub))
    vmem_limit = min(int(vmem_cap * 0.85), tile_budget + (16 << 20))

    grid = (pl.cdiv(m, bm),)

    cost = pl.CostEstimate(
        flops=2 * m * r_pad * (in_dim + out_dim),
        transcendentals=0,
        bytes_accessed=(m * in_dim + in_dim * r_pad + r_pad * out_dim
                        + m * out_dim) * itemsize,
    )

    out2d = pl.pallas_call(
        functools.partial(_lora_kernel, scaling=scaling),
        out_shape=jax.ShapeDtypeStruct((m, out_dim), dtype),
        grid_spec=pltpu.PrefetchScalarGridSpec(
            num_scalar_prefetch=0,
            grid=grid,
            in_specs=[
                # x tiled over M; weights resident (constant block index).
                pl.BlockSpec((bm, in_dim), lambda i: (i, 0)),
                pl.BlockSpec((in_dim, r_pad), lambda i: (0, 0)),
                pl.BlockSpec((r_pad, out_dim), lambda i: (0, 0)),
            ],
            # True out_dim (full-extent last dim): no padded output + slice copy.
            out_specs=pl.BlockSpec((bm, out_dim), lambda i: (i, 0)),
        ),
        compiler_params=pltpu.CompilerParams(
            dimension_semantics=("parallel",),   # shard M tiles across v7x's 2 TCs
            vmem_limit_bytes=vmem_limit,
        ),
        cost_estimate=cost,
    )(x2d, w_a, w_b)

    return out2d.reshape(*lead_shape, out_dim)


if __name__ == "__main__":
    key = jax.random.PRNGKey(0)
    kx, ka, kb, kx2, ka2, kb2, kx3, ka3, kb3 = jax.random.split(key, 9)

    # --- Case 1: small f32 shapes from the module (force the Pallas path) -----
    batch, seq, in_dim, out_dim = 2, 8, 32, 32
    rank, alpha = 4, 8
    std_dev = 1.0 / jnp.sqrt(jnp.float32(rank))
    # PyTorch init: W_a = randn(in_dim, rank)/sqrt(rank), W_b = zeros; use a small
    # non-zero W_b so the output is non-trivial and checkable.
    w_a = jax.random.normal(ka, (in_dim, rank), dtype=jnp.float32) * std_dev
    w_b = jax.random.normal(kb, (rank, out_dim), dtype=jnp.float32) * 0.01
    x = jax.random.normal(kx, (batch, seq, in_dim), dtype=jnp.float32)

    y = jax.block_until_ready(lora_forward(x, w_a, w_b, rank, alpha, force_pallas=True))
    scaling = alpha / rank
    y_ref = scaling * (x @ w_a @ w_b)
    assert y.shape == (batch, seq, out_dim)
    assert jnp.allclose(y, y_ref, atol=1e-5, rtol=1e-5)

    # --- Case 2: bf16, lane-dense out_dim, multi-step pipelined grid -----------
    b2, s2, in2, out2, r2 = 2, 128, 256, 384, 8
    std2 = 1.0 / jnp.sqrt(jnp.float32(r2))
    w_a2 = (jax.random.normal(ka2, (in2, r2), dtype=jnp.float32) * std2).astype(jnp.bfloat16)
    w_b2 = (jax.random.normal(kb2, (r2, out2), dtype=jnp.float32) * 0.01).astype(jnp.bfloat16)
    x2 = jax.random.normal(kx2, (b2, s2, in2), dtype=jnp.float32).astype(jnp.bfloat16)

    y2 = jax.block_until_ready(
        lora_forward(x2, w_a2, w_b2, r2, alpha, block_m=128, force_pallas=True))
    scaling2 = alpha / r2
    y2_ref = scaling2 * (x2.astype(jnp.float32)
                         @ w_a2.astype(jnp.float32)
                         @ w_b2.astype(jnp.float32))
    assert y2.shape == (b2, s2, out2)
    assert jnp.allclose(y2.astype(jnp.float32), y2_ref, atol=5e-2, rtol=5e-2)

    # --- Case 3: f32, out_dim NOT a multiple of 128 (unpadded output path) -----
    b3, s3, in3, out3, r3 = 3, 64, 96, 200, 4
    std3 = 1.0 / jnp.sqrt(jnp.float32(r3))
    w_a3 = jax.random.normal(ka3, (in3, r3), dtype=jnp.float32) * std3
    w_b3 = jax.random.normal(kb3, (r3, out3), dtype=jnp.float32) * 0.01
    x3 = jax.random.normal(kx3, (b3, s3, in3), dtype=jnp.float32)

    y3 = jax.block_until_ready(lora_forward(x3, w_a3, w_b3, r3, alpha, force_pallas=True))
    y3_ref = (alpha / r3) * (x3 @ w_a3 @ w_b3)
    assert y3.shape == (b3, s3, out3)
    assert jnp.allclose(y3, y3_ref, atol=1e-4, rtol=1e-4)

    # --- Case 4: rank == 0 path (matches PyTorch: zeros with x's shape) --------
    w_a0 = jnp.zeros((in_dim, out_dim), dtype=jnp.float32)
    w_b0 = jnp.zeros((out_dim, out_dim), dtype=jnp.float32)
    y0 = jax.block_until_ready(lora_forward(x, w_a0, w_b0, 0, alpha))
    assert y0.shape == x.shape
    assert jnp.all(y0 == 0)

    print("KERNEL_OK")
</pallas_src>

<mosaic_0001>
module attributes {stable_mosaic.version = 11 : i64} {
  func.func @_lora_kernel(%arg0: i32, %arg1: memref<16x32xf32, #tpu.memory_space<vmem>>, %arg2: memref<32x8xf32, #tpu.memory_space<vmem>>, %arg3: memref<8x32xf32, #tpu.memory_space<vmem>>, %arg4: memref<16x32xf32, #tpu.memory_space<vmem>>) attributes {dimension_semantics = [#tpu.dimension_semantics<parallel>], iteration_bounds = array<i64: 1>, scalar_prefetch = 0 : i64, scratch_operands = 0 : i64, tpu.core_type = #tpu.core_type<tc>, window_params = [{transform_indices = @transform_0, window_bounds = array<i64: 16, 32>}, {pipeline_mode = #tpu.pipeline_mode<synchronous>, transform_indices = @transform_1, window_bounds = array<i64: 32, 8>}, {pipeline_mode = #tpu.pipeline_mode<synchronous>, transform_indices = @transform_2, window_bounds = array<i64: 8, 32>}, {transform_indices = @transform_3, window_bounds = array<i64: 16, 32>}]} {
    %c0 = arith.constant 0 : index
    %c0_0 = arith.constant 0 : index
    %0 = vector.load %arg1[%c0, %c0_0] : memref<16x32xf32, #tpu.memory_space<vmem>>, vector<16x32xf32>
    %c0_1 = arith.constant 0 : index
    %c0_2 = arith.constant 0 : index
    %1 = vector.load %arg2[%c0_1, %c0_2] : memref<32x8xf32, #tpu.memory_space<vmem>>, vector<32x8xf32>
    %cst = arith.constant dense<0.000000e+00> : vector<16x8xf32>
    %2 = tpu.matmul %0, %1, %cst {dimension_numbers = #tpu.dot_dimension_numbers<[1], [0], [0], [1], [0, 0, 1, 1], [], []>} : vector<16x32xf32>, vector<32x8xf32>, vector<16x8xf32> -> vector<16x8xf32>
    %cst_3 = arith.constant 2.000000e+00 : f32
    %3 = vector.broadcast %cst_3 : f32 to vector<16x8xf32>
    %4 = arith.mulf %3, %2 : vector<16x8xf32>
    %c0_4 = arith.constant 0 : index
    %c0_5 = arith.constant 0 : index
    %5 = vector.load %arg3[%c0_4, %c0_5] : memref<8x32xf32, #tpu.memory_space<vmem>>, vector<8x32xf32>
    %cst_6 = arith.constant dense<0.000000e+00> : vector<16x32xf32>
    %6 = tpu.matmul %4, %5, %cst_6 {dimension_numbers = #tpu.dot_dimension_numbers<[1], [0], [0], [1], [0, 0, 1, 1], [], []>} : vector<16x8xf32>, vector<8x32xf32>, vector<16x32xf32> -> vector<16x32xf32>
    %c0_7 = arith.constant 0 : index
    %c0_8 = arith.constant 0 : index
    %7 = vector.load %arg4[%c0_7, %c0_8] : memref<16x32xf32, #tpu.memory_space<vmem>>, vector<16x32xf32>
    tpu.vector_store %arg4[%c0_7, %c0_8], %6 {strides = array<i32>} : memref<16x32xf32, #tpu.memory_space<vmem>>, vector<16x32xf32>,
    return
  }
  func.func @transform_0(%arg0: i32) -> (i32, i32) {
    %c0_i32 = arith.constant 0 : i32
    %c0_i32_0 = arith.constant 0 : i32
    return %arg0, %c0_i32 : i32, i32
  }
  func.func @transform_1(%arg0: i32) -> (i32, i32) {
    %c0_i32 = arith.constant 0 : i32
    %c0_i32_0 = arith.constant 0 : i32
    %c0_i32_1 = arith.constant 0 : i32
    return %c0_i32, %c0_i32_0 : i32, i32
  }
  func.func @transform_2(%arg0: i32) -> (i32, i32) {
    %c0_i32 = arith.constant 0 : i32
    %c0_i32_0 = arith.constant 0 : i32
    %c0_i32_1 = arith.constant 0 : i32
    return %c0_i32, %c0_i32_0 : i32, i32
  }
  func.func @transform_3(%arg0: i32) -> (i32, i32) {
    %c0_i32 = arith.constant 0 : i32
    %c0_i32_0 = arith.constant 0 : i32
    return %arg0, %c0_i32 : i32, i32
  }
}

</mosaic_0001>

<llo_original>
// kernel: tpu_custom_call.1
$region0: #{tpu_custom_call.1}
  #allocation0 [shape = 'u32[]', space=smem, size = 0x4, offset = 0x4, fixed_abs, tag = 'smem constant byte address 0x4 - core index']
  #allocation1 [shape = 'u32[144,128]{1,0:T(1,128)}', space=vmem, size = 0x12000, scoped, tag = 'internal scratch']
  %s0 = inlined_call_operand.vmem [shape: f32[16,32], index: 0, kind: input, shape index: {}]
  %s1 = inlined_call_operand.vmem [shape: f32[32,8], index: 1, kind: input, shape index: {}]
  %s2 = inlined_call_operand.vmem [shape: f32[8,32], index: 2, kind: input, shape index: {}]
  %s3 = inlined_call_operand.hbm [shape: f32[16,32], index: 3, kind: output, shape index: {}]
  %s4 = sld [smem:[#allocation0]]
  $region22: #{tpu_custom_call.1} parent=0
    _
  %s6 = ssub.s32 1, %s4
  %s7 = scalar_select 0, %s6, %s4
  $region1: #{tpu_custom_call.1} parent=0
    #allocation2 [shape = 'u8[8192]{0}', space=vmem, size = 0x2000, scoped, tag = 'output window, operand 0, single buffered']
    #allocation3 [shape = 's32[1]{0}', space=sflag, size = 0x4, scoped, tag = 'scoped memory for tpu_custom_call.1']
    %8 = vsyncpa [#allocation3], 0
    // Predicated region
    $region2: #{tpu_custom_call.1} parent=1 // pred_check
      _
    $region3: #{tpu_custom_call.1} parent=1 // pred_check_branch
      %10 = sbr.rel (0) target = $region5
    $region4: #{tpu_custom_call.1} parent=1 // pred_region
      _
    $region5: #{tpu_custom_call.1} parent=1 // pred_fallthru
      _
    // Predicated region
    $region6: #{tpu_custom_call.1} parent=1 // pred_check
      _
    $region7: #{tpu_custom_call.1} parent=1 // pred_check_branch
      %12 = sbr.rel (0) target = $region9
    $region8: #{tpu_custom_call.1} parent=1 // pred_region
      _
    $region9: #{tpu_custom_call.1} parent=1 // pred_fallthru
      _
    // Predicated region
    $region10: #{tpu_custom_call.1} parent=1 // pred_check
      _
    $region11: #{tpu_custom_call.1} parent=1 // pred_check_branch
      %14 = sbr.rel (0) target = $region13
    $region12: #{tpu_custom_call.1} parent=1 // pred_region
      _
    $region13: #{tpu_custom_call.1} parent=1 // pred_fallthru
      _
    %v15 = vld [vmem:[%s0] sm:$0xff]
    %v16 = vld [vmem:[%s0 + $0x8] sm:$0xff]
    %v17 = vld [vmem:[%s1] sm:$0xff]
    %v18 = vld [vmem:[%s1 + $0x8] sm:$0xff]
    %v19 = vld [vmem:[%s1 + $0x10] sm:$0xff]
    %v20 = vld [vmem:[%s1 + $0x18] sm:$0xff]
    %vm21 = vcmask 261120
    %v23 = vsel %vm21, %v15, 0
    %v26 = vsel %vm21, %v16, 0
    %28 = vmatprep.subr.mxu0 0.0
    %29 = vmatpush1.msra.mxu0 %v17
    %30 = vmatprep.subr.mxu0 0.0
    %31 = vmatpush1.msra.mxu0 %v18
    %32 = vmatprep.subr.mxu0 0.0
    %33 = vmatpush1.msra.mxu0 %v19
    %34 = vmatprep.subr.mxu0 0.0
    %35 = vmatpush1.msra.mxu0 %v20
    %36 = vmatprep.subr.mxu0 0.0
    %37 = vmatpush1.msra.mxu0 0.0
    %38 = vmatprep.subr.mxu0 0.0
    %39 = vmatpush1.msra.mxu0 0.0
    %40 = vmatprep.subr.mxu0 0.0
    %41 = vmatpush1.msra.mxu0 0.0
    %42 = vmatprep.subr.mxu0 0.0
    %43 = vmatpush1.msra.mxu0 0.0
    %44 = vmatprep.subr.mxu0 0.0
    %45 = vmatpush1.msra.mxu0 0.0
    %46 = vmatprep.subr.mxu0 0.0
    %47 = vmatpush1.msra.mxu0 0.0
    %48 = vmatprep.subr.mxu0 0.0
    %49 = vmatpush1.msra.mxu0 0.0
    %50 = vmatprep.subr.mxu0 0.0
    %51 = vmatpush1.msra.mxu0 0.0
    %52 = vmatprep.subr.mxu0 0.0
    %53 = vmatpush1.msra.mxu0 0.0
    %54 = vmatprep.subr.mxu0 0.0
    %55 = vmatpush1.msra.mxu0 0.0
    %56 = vmatprep.subr.mxu0 0.0
    %57 = vmatpush1.msra.mxu0 0.0
    %58 = vmatprep.subr.mxu0 0.0
    %59 = vmatpush1.msra.mxu0 0.0
    %60 = vmatprep.subr.mxu0 0.0
    %61 = vmatpush1.msra.mxu0 0.0
    %62 = vmatprep.subr.mxu0 0.0
    %63 = vmatpush1.msra.mxu0 0.0
    %64 = vmatprep.subr.mxu0 0.0
    %65 = vmatpush1.msra.mxu0 0.0
    %66 = vmatprep.subr.mxu0 0.0
    %67 = vmatpush1.msra.mxu0 0.0
    %68 = vmatprep.subr.mxu0 0.0
    %69 = vmatpush1.msra.mxu0 0.0
    %70 = vmatprep.subr.mxu0 0.0
    %71 = vmatpush1.msra.mxu0 0.0
    %72 = vmatprep.subr.mxu0 0.0
    %73 = vmatpush1.msra.mxu0 0.0
    %74 = vmatprep.subr.mxu0 0.0
    %75 = vmatpush1.msra.mxu0 0.0
    %76 = vmatprep.subr.mxu0 0.0
    %77 = vmatpush1.msra.mxu0 0.0
    %78 = vmatprep.subr.mxu0 0.0
    %79 = vmatpush1.msra.mxu0 0.0
    %80 = vmatprep.subr.mxu0 0.0
    %81 = vmatpush1.msra.mxu0 0.0
    %82 = vmatprep.subr.mxu0 0.0
    %83 = vmatpush1.msra.mxu0 0.0
    %84 = vmatprep.subr.mxu0 0.0
    %85 = vmatpush1.msra.mxu0 0.0
    %86 = vmatprep.subr.mxu0 0.0
    %87 = vmatpush1.msra.mxu0 0.0
    %88 = vmatprep.subr.mxu0 0.0
    %89 = vmatpush1.msra.mxu0 0.0
    %90 = vmatprep.subr.mxu0 0.0
    %91 = vmatpush1.msra.mxu0 0.0
    %92 = vmatprep.mubr.f32.mxu0 0.0
    %93 = vmatmul.mubr.f32.gmra.mrb[0].mxu0 %v23
    %v94 = vpop.f32.mrb[0].mxu0
    %v95 = vadd.f32 0.0, %v94
    %v96 = vpop.f32.mrb[0].mxu0
    %97 = vmatprep.mubr.f32.mxu0 0.0
    %98 = vmatmul.mubr.f32.gmra.mrb[0].mxu0 %v26
    %v99 = vpop.f32.mrb[0].mxu0
    %v100 = vadd.f32 0.0, %v99
    %v101 = vpop.f32.mrb[0].mxu0
    %102 = vdwg.mxu0
    %v103 = vmul.f32 %v95, 2.0
    %v104 = vmul.f32 %v100, 2.0
    %v105 = vld [vmem:[%s2] sm:$0xff]
    %vm106 = vcmask 64512
    %v108 = vsel %vm106, %v103, 0
    %v111 = vsel %vm106, %v104, 0
    %113 = vmatprep.subr.mxu0 0.0
    %114 = vmatpush1.msra.mxu0 %v105
    %115 = vmatprep.subr.mxu0 0.0
    %116 = vmatpush1.msra.mxu0 0.0
    %117 = vmatprep.subr.mxu0 0.0
    %118 = vmatpush1.msra.mxu0 0.0
    %119 = vmatprep.subr.mxu0 0.0
    %120 = vmatpush1.msra.mxu0 0.0
    %121 = vmatprep.subr.mxu0 0.0
    %122 = vmatpush1.msra.mxu0 0.0
    %123 = vmatprep.subr.mxu0 0.0
    %124 = vmatpush1.msra.mxu0 0.0
    %125 = vmatprep.subr.mxu0 0.0
    %126 = vmatpush1.msra.mxu0 0.0
    %127 = vmatprep.subr.mxu0 0.0
    %128 = vmatpush1.msra.mxu0 0.0
    %129 = vmatprep.subr.mxu0 0.0
    %130 = vmatpush1.msra.mxu0 0.0
    %131 = vmatprep.subr.mxu0 0.0
    %132 = vmatpush1.msra.mxu0 0.0
    %133 = vmatprep.subr.mxu0 0.0
    %134 = vmatpush1.msra.mxu0 0.0
    %135 = vmatprep.subr.mxu0 0.0
    %136 = vmatpush1.msra.mxu0 0.0
    %137 = vmatprep.subr.mxu0 0.0
    %138 = vmatpush1.msra.mxu0 0.0
    %139 = vmatprep.subr.mxu0 0.0
    %140 = vmatpush1.msra.mxu0 0.0
    %141 = vmatprep.subr.mxu0 0.0
    %142 = vmatpush1.msra.mxu0 0.0
    %143 = vmatprep.subr.mxu0 0.0
    %144 = vmatpush1.msra.mxu0 0.0
    %145 = vmatprep.subr.mxu0 0.0
    %146 = vmatpush1.msra.mxu0 0.0
    %147 = vmatprep.subr.mxu0 0.0
    %148 = vmatpush1.msra.mxu0 0.0
    %149 = vmatprep.subr.mxu0 0.0
    %150 = vmatpush1.msra.mxu0 0.0
    %151 = vmatprep.subr.mxu0 0.0
    %152 = vmatpush1.msra.mxu0 0.0
    %153 = vmatprep.subr.mxu0 0.0
    %154 = vmatpush1.msra.mxu0 0.0
    %155 = vmatprep.subr.mxu0 0.0
    %156 = vmatpush1.msra.mxu0 0.0
    %157 = vmatprep.subr.mxu0 0.0
    %158 = vmatpush1.msra.mxu0 0.0
    %159 = vmatprep.subr.mxu0 0.0
    %160 = vmatpush1.msra.mxu0 0.0
    %161 = vmatprep.subr.mxu0 0.0
    %162 = vmatpush1.msra.mxu0 0.0
    %163 = vmatprep.subr.mxu0 0.0
    %164 = vmatpush1.msra.mxu0 0.0
    %165 = vmatprep.subr.mxu0 0.0
    %166 = vmatpush1.msra.mxu0 0.0
    %167 = vmatprep.subr.mxu0 0.0
    %168 = vmatpush1.msra.mxu0 0.0
    %169 = vmatprep.subr.mxu0 0.0
    %170 = vmatpush1.msra.mxu0 0.0
    %171 = vmatprep.subr.mxu0 0.0
    %172 = vmatpush1.msra.mxu0 0.0
    %173 = vmatprep.subr.mxu0 0.0
    %174 = vmatpush1.msra.mxu0 0.0
    %175 = vmatprep.subr.mxu0 0.0
    %176 = vmatpush1.msra.mxu0 0.0
    %177 = vmatprep.mubr.f32.mxu0 0.0
    %178 = vmatmul.mubr.f32.gmra.mrb[0].mxu0 %v108
    %v179 = vpop.f32.mrb[0].mxu0
    %v180 = vadd.f32 0.0, %v179
    %v181 = vpop.f32.mrb[0].mxu0
    %182 = vmatprep.mubr.f32.mxu0 0.0
    %183 = vmatmul.mubr.f32.gmra.mrb[0].mxu0 %v111
    %v184 = vpop.f32.mrb[0].mxu0
    %v185 = vadd.f32 0.0, %v184
    %v186 = vpop.f32.mrb[0].mxu0
    %187 = vdwg.mxu0
    %188 = vst.msk [vmem:[#allocation2] sm:$0xff] %vm21, %v180
    %189 = vst.msk [vmem:[#allocation2 + $0x8] sm:$0xff] %vm21, %v185
    // Predicated region
    $region14: #{tpu_custom_call.1} parent=1 // pred_check
      _
    $region15: #{tpu_custom_call.1} parent=1 // pred_check_branch
      %191 = sbr.rel (0) target = $region17
    $region16: #{tpu_custom_call.1} parent=1 // pred_region
      %s193 = ssub.s32 256, 256
      %194 = vsyncadd [#allocation3], %s193
      %s195 = sshll.u32 [#allocation2], 4
      %s196 = int_to_ptr.vmem [resolvable:$true] %s195
      %201 = dma.vmem_to_hbm [thread:$0]  %s196, 256, %s3, [#allocation3], 128, 128, 8
    $region17: #{tpu_custom_call.1} parent=1 // pred_fallthru
      _
    // Predicated region
    $region18: #{tpu_custom_call.1} parent=1 // pred_check
      _
    $region19: #{tpu_custom_call.1} parent=1 // pred_check_branch
      %203 = sbr.rel (0) target = $region21
    $region20: #{tpu_custom_call.1} parent=1 // pred_region
      %204 = dma.done [#allocation3], 256
    $region21: #{tpu_custom_call.1} parent=1 // pred_fallthru
      _
    %205 = vsyncpa [#allocation3], 1

</llo_original>
